<compile_context>
chip_gen: v5e
topology: v5e:2x2
jax: 0.10.0
libtpu: 0.0.40
codegen_flags: <defaults>
</compile_context>

<pallas_src>
import functools
import math

import numpy as np
import jax
import jax.numpy as jnp
from jax import lax
from jax.experimental import pallas as pl
from jax.experimental.pallas import tpu as pltpu


def _roll_minor(x, dw, w):
    """result[..., cc] = x[..., (cc + dw) % w]  (static dw)."""
    sh = dw % w
    if sh == 0:
        return x
    if w % 128 == 0:
        # Lane-aligned production widths: single XLU rotate.
        return pltpu.roll(x, shift=w - sh, axis=x.ndim - 1)
    # Small / lane-unaligned widths: two lane slices, no zeros temp, no select.
    return jnp.concatenate([x[..., sh:], x[..., :sh]], axis=-1)


def _corr_kernel(x1_ref, x2_ref, out_ref, x2pad_ref, *,
                 h, w, dws, n_dh, s2, dh_neg, dh_pos, s1, inv_c):
    """One grid step = one batch element.

    x1_ref   : VMEM (1, c, h, w)            reference feature map
    x2_ref   : VMEM (1, c, h, w)            search feature map
    out_ref  : VMEM (1, D, H_out, W_out)    correlation volume
    x2pad_ref: VMEM (c, h+dh_neg+dh_pos, w) row-padded, dw-shifted x2 scratch
    """
    x1v = x1_ref[0].astype(jnp.float32)          # (c, h, w)
    x2v = x2_ref[0].astype(jnp.float32)          # (c, h, w)
    c = x1v.shape[0]

    # Zero the halo rows once per grid step: implicit zero padding in the H
    # direction is then exact (out-of-range rows read true zeros).
    if dh_neg > 0:
        x2pad_ref[:, :dh_neg, :] = jnp.zeros((c, dh_neg, w), jnp.float32)
    if dh_pos > 0:
        x2pad_ref[:, dh_neg + h:, :] = jnp.zeros((c, dh_pos, w), jnp.float32)

    # In-kernel validity coordinates (no HBM mask input).
    rows = lax.broadcasted_iota(jnp.int32, (h, w), 0)
    cols = lax.broadcasted_iota(jnp.int32, (h, w), 1)
    n_dw = len(dws)

    for j, dw in enumerate(dws):                 # static unroll over dw only
        # One W-shift per dw, hoisted out of the dh loop; wrapped columns are
        # removed by the select below.
        x2pad_ref[:, dh_neg:dh_neg + h, :] = _roll_minor(x2v, dw, w)
        col_ok = jnp.logical_and(cols + dw >= 0, cols + dw < w)   # (h, w)

        @pl.loop(0, n_dh)                        # dh = pure sublane address offset
        def _(i):
            dh = i * s2 - dh_neg                                   # traced scalar
            shifted = x2pad_ref[:, pl.ds(i * s2, h), :]            # (c, h, w) load
            corr = jnp.sum(x1v * shifted, axis=0)                  # (h, w), VPU only
            row_ok = jnp.logical_and(rows + dh >= 0, rows + dh < h)
            plane = jnp.where(jnp.logical_and(row_ok, col_ok),
                              corr * inv_c, 0.0)                   # exact zeros
            if s1 != 1:
                plane = plane[::s1, ::s1]        # fused output subsampling
            out_ref[0, i * n_dw + j] = plane.astype(out_ref.dtype)


def _padded_bytes(shape, itemsize):
    """VMEM footprint of a block after (8, 128) tiling of the last two dims."""
    s = list(shape)
    s[-1] = -(-s[-1] // 128) * 128
    if len(s) >= 2:
        s[-2] = -(-s[-2] // 8) * 8
    n = 1
    for d in s:
        n *= d
    return n * itemsize


def asymmetric_correlation(x1, x2, *, k=0, dw_pos, dw_neg, dh_pos, dh_neg,
                           s1, s2):
    """Pallas implementation of NaiveAsymmetricCorrelationBlock.forward.

    x1, x2: (n, c, h, w) float32 or bfloat16 (NCHW).  bf16 inputs halve input
    DMA; compute/accumulation is f32 either way.
    Returns (n, D, ceil(h/s1), ceil(w/s1)) float32.
    """
    assert k == 0, "kernel size not implemented (same as the reference module)"
    assert x1.shape == x2.shape
    n, c, h, w = x1.shape

    dhs = list(range(-dh_neg, dh_pos + 1, s2))
    dws = list(range(-dw_neg, dw_pos + 1, s2))
    D = len(dhs) * len(dws)
    assert D == ((dw_pos + dw_neg) // s2 + 1) * ((dh_pos + dh_neg) // s2 + 1)
    H_out = math.ceil(h / s1)
    W_out = math.ceil(w / s1)
    h_pad = h + dh_neg + dh_pos

    kernel = functools.partial(
        _corr_kernel, h=h, w=w, dws=tuple(dws), n_dh=len(dhs), s2=s2,
        dh_neg=dh_neg, dh_pos=dh_pos, s1=s1, inv_c=1.0 / float(c))

    # Explicit VMEM budget: double-buffered in/out blocks + scratch, padded to
    # the (8,128) tile layout, with headroom.  Capped below v7x's 64 MiB.
    need = (2 * (_padded_bytes((1, c, h, w), x1.dtype.itemsize)
                 + _padded_bytes((1, c, h, w), x2.dtype.itemsize)
                 + _padded_bytes((1, D, H_out, W_out), 4))
            + _padded_bytes((c, h_pad, w), 4))
    vmem_limit = int(min(max(2 * need, 32 << 20), 56 << 20))

    cost = pl.CostEstimate(
        flops=2 * n * D * h * w * c,
        transcendentals=0,
        bytes_accessed=int(x1.size * x1.dtype.itemsize
                           + x2.size * x2.dtype.itemsize
                           + n * D * H_out * W_out * 4))

    # TODO(synk): for production spatial sizes add an H-tile grid axis with a
    # dh-halo window (pl.ANY + manual DMA) so double-buffered blocks fit v7x's
    # 64 MiB VMEM; whole-image blocks are fine at these shapes.
    out = pl.pallas_call(
        kernel,
        out_shape=jax.ShapeDtypeStruct((n, D, H_out, W_out), jnp.float32),
        grid_spec=pltpu.PrefetchScalarGridSpec(
            num_scalar_prefetch=0,
            grid=(n,),
            in_specs=[
                pl.BlockSpec((1, c, h, w), lambda ni: (ni, 0, 0, 0)),
                pl.BlockSpec((1, c, h, w), lambda ni: (ni, 0, 0, 0)),
            ],
            out_specs=pl.BlockSpec((1, D, H_out, W_out),
                                   lambda ni: (ni, 0, 0, 0)),
            scratch_shapes=[pltpu.VMEM((c, h_pad, w), jnp.float32)],
        ),
        compiler_params=pltpu.CompilerParams(
            dimension_semantics=("parallel",),
            vmem_limit_bytes=vmem_limit),
        cost_estimate=cost,
    )(x1, x2)
    return out


def _reference_corr(x1, x2, *, dw_pos, dw_neg, dh_pos, dh_neg, s1, s2):
    """Pure-numpy transcription of the PyTorch forward (for verification)."""
    n, c, h, w = x1.shape
    dhs = list(range(-dh_neg, dh_pos + 1, s2))
    dws = list(range(-dw_neg, dw_pos + 1, s2))
    H_out = math.ceil(h / s1)
    W_out = math.ceil(w / s1)
    out = np.zeros((n, len(dhs) * len(dws), H_out, W_out), np.float32)
    for ni in range(n):
        d = 0
        for dh in dhs:
            for dw in dws:
                for oh, hh in enumerate(range(0, h, s1)):
                    for ow, ww in enumerate(range(0, w, s1)):
                        if 0 <= hh + dh < h and 0 <= ww + dw < w:
                            out[ni, d, oh, ow] = (
                                np.dot(x1[ni, :, hh, ww],
                                       x2[ni, :, hh + dh, ww + dw]) / c)
                d += 1
    return out


if __name__ == "__main__":
    # Module config (k must be 0, per the reference implementation).
    cfg = dict(k=0, dw_pos=1, dw_neg=2, dh_pos=1, dh_neg=1, s1=1, s2=1)

    n, c, h, w = 2, 4, 16, 16
    key = jax.random.PRNGKey(0)
    k1, k2 = jax.random.split(key)
    x1 = jax.random.normal(k1, (n, c, h, w), dtype=jnp.float32)
    x2 = jax.random.normal(k2, (n, c, h, w), dtype=jnp.float32)

    out = asymmetric_correlation(x1, x2, **cfg)
    out = jax.block_until_ready(out)

    ref = _reference_corr(np.asarray(x1), np.asarray(x2),
                          **{kk: vv for kk, vv in cfg.items() if kk != "k"})

    assert out.shape == ref.shape, (out.shape, ref.shape)
    np.testing.assert_allclose(np.asarray(out), ref, rtol=1e-5, atol=1e-5)
    print("KERNEL_OK")
</pallas_src>

<mosaic_0001>
module attributes {stable_mosaic.version = 11 : i64} {
  func.func @_corr_kernel(%arg0: i32, %arg1: memref<1x4x16x16xf32, #tpu.memory_space<vmem>>, %arg2: memref<1x4x16x16xf32, #tpu.memory_space<vmem>>, %arg3: memref<1x12x16x16xf32, #tpu.memory_space<vmem>>, %arg4: memref<4x18x16xf32, #tpu.memory_space<vmem>>) attributes {dimension_semantics = [#tpu.dimension_semantics<parallel>], iteration_bounds = array<i64: 2>, scalar_prefetch = 0 : i64, scratch_operands = 1 : i64, tpu.core_type = #tpu.core_type<tc>, window_params = [{transform_indices = @transform_0, window_bounds = array<i64: 1, 4, 16, 16>}, {transform_indices = @transform_1, window_bounds = array<i64: 1, 4, 16, 16>}, {transform_indices = @transform_2, window_bounds = array<i64: 1, 12, 16, 16>}]} {
    %c0 = arith.constant 0 : index
    %c0_0 = arith.constant 0 : index
    %c0_1 = arith.constant 0 : index
    %c0_2 = arith.constant 0 : index
    %0 = vector.load %arg1[%c0, %c0_0, %c0_1, %c0_2] : memref<1x4x16x16xf32, #tpu.memory_space<vmem>>, vector<1x4x16x16xf32>
    %1 = vector.shape_cast %0 : vector<1x4x16x16xf32> to vector<4x16x16xf32>
    %c0_3 = arith.constant 0 : index
    %c0_4 = arith.constant 0 : index
    %c0_5 = arith.constant 0 : index
    %c0_6 = arith.constant 0 : index
    %2 = vector.load %arg2[%c0_3, %c0_4, %c0_5, %c0_6] : memref<1x4x16x16xf32, #tpu.memory_space<vmem>>, vector<1x4x16x16xf32>
    %3 = vector.shape_cast %2 : vector<1x4x16x16xf32> to vector<4x16x16xf32>
    %cst = arith.constant 0.000000e+00 : f32
    %4 = vector.broadcast %cst : f32 to vector<4x1x16xf32>
    %c0_7 = arith.constant 0 : index
    %c0_8 = arith.constant 0 : index
    %c0_9 = arith.constant 0 : index
    %5 = vector.load %arg4[%c0_7, %c0_8, %c0_9] : memref<4x18x16xf32, #tpu.memory_space<vmem>>, vector<4x1x16xf32>
    tpu.vector_store %arg4[%c0_7, %c0_8, %c0_9], %4 {strides = array<i32>} : memref<4x18x16xf32, #tpu.memory_space<vmem>>, vector<4x1x16xf32>,
    %cst_10 = arith.constant 0.000000e+00 : f32
    %6 = vector.broadcast %cst_10 : f32 to vector<4x1x16xf32>
    %c0_11 = arith.constant 0 : index
    %c17 = arith.constant 17 : index
    %c0_12 = arith.constant 0 : index
    %7 = vector.load %arg4[%c0_11, %c17, %c0_12] : memref<4x18x16xf32, #tpu.memory_space<vmem>>, vector<4x1x16xf32>
    tpu.vector_store %arg4[%c0_11, %c17, %c0_12], %6 {strides = array<i32>} : memref<4x18x16xf32, #tpu.memory_space<vmem>>, vector<4x1x16xf32>,
    %8 = tpu.iota {dimensions = array<i32: 0>} : vector<16x16xi32>
    %9 = tpu.iota {dimensions = array<i32: 1>} : vector<16x16xi32>
    %10 = vector.extract_strided_slice %3 {offsets = [0, 0, 14], sizes = [4, 16, 2], strides = [1, 1, 1]} : vector<4x16x16xf32> to vector<4x16x2xf32>
    %11 = vector.extract_strided_slice %3 {offsets = [0, 0, 0], sizes = [4, 16, 14], strides = [1, 1, 1]} : vector<4x16x16xf32> to vector<4x16x14xf32>
    %12 = tpu.concatenate %10, %11 in 2 : vector<4x16x2xf32>, vector<4x16x14xf32> -> vector<4x16x16xf32>
    %c0_13 = arith.constant 0 : index
    %c1 = arith.constant 1 : index
    %c0_14 = arith.constant 0 : index
    %13 = vector.load %arg4[%c0_13, %c1, %c0_14] : memref<4x18x16xf32, #tpu.memory_space<vmem>>, vector<4x16x16xf32>
    tpu.vector_store %arg4[%c0_13, %c1, %c0_14], %12 {strides = array<i32>} : memref<4x18x16xf32, #tpu.memory_space<vmem>>, vector<4x16x16xf32>,
    %c-2_i32 = arith.constant -2 : i32
    %14 = vector.broadcast %c-2_i32 : i32 to vector<16x16xi32>
    %15 = arith.addi %9, %14 : vector<16x16xi32>
    %c0_i32 = arith.constant 0 : i32
    %16 = vector.broadcast %c0_i32 : i32 to vector<16x16xi32>
    %17 = arith.cmpi sge, %15, %16 : vector<16x16xi32>
    %c-2_i32_15 = arith.constant -2 : i32
    %18 = vector.broadcast %c-2_i32_15 : i32 to vector<16x16xi32>
    %19 = arith.addi %9, %18 : vector<16x16xi32>
    %c16_i32 = arith.constant 16 : i32
    %20 = vector.broadcast %c16_i32 : i32 to vector<16x16xi32>
    %21 = arith.cmpi slt, %19, %20 : vector<16x16xi32>
    %22 = arith.andi %17, %21 : vector<16x16xi1>
    %c0_i32_16 = arith.constant 0 : i32
    %c3_i32 = arith.constant 3 : i32
    %23 = arith.addi %c0_i32_16, %c3_i32 : i32
    %c1_i32 = arith.constant 1 : i32
    scf.for %arg5 = %c0_i32_16 to %23 step %c1_i32  : i32 {
      %c1_i32_50 = arith.constant 1 : i32
      %63 = arith.muli %arg5, %c1_i32_50 : i32
      %c0_i32_51 = arith.constant 0 : i32
      %64 = arith.addi %c0_i32_51, %63 : i32
      %c1_i32_52 = arith.constant 1 : i32
      %65 = arith.muli %64, %c1_i32_52 : i32
      %c1_i32_53 = arith.constant 1 : i32
      %66 = arith.subi %65, %c1_i32_53 : i32
      %c1_i32_54 = arith.constant 1 : i32
      %67 = arith.muli %64, %c1_i32_54 : i32
      %c0_55 = arith.constant 0 : index
      %68 = arith.index_cast %67 : i32 to index
      %c0_56 = arith.constant 0 : index
      %69 = vector.load %arg4[%c0_55, %68, %c0_56] : memref<4x18x16xf32, #tpu.memory_space<vmem>>, vector<4x16x16xf32>
      %70 = arith.mulf %1, %69 : vector<4x16x16xf32>
      %cst_57 = arith.constant dense<0.000000e+00> : vector<16x16xf32>
      %71 = vector.multi_reduction <add>, %70, %cst_57 [0] : vector<4x16x16xf32> to vector<16x16xf32>
      %72 = vector.broadcast %66 : i32 to vector<16x16xi32>
      %73 = arith.addi %8, %72 : vector<16x16xi32>
      %c0_i32_58 = arith.constant 0 : i32
      %74 = vector.broadcast %c0_i32_58 : i32 to vector<16x16xi32>
      %75 = arith.cmpi sge, %73, %74 : vector<16x16xi32>
      %76 = vector.broadcast %66 : i32 to vector<16x16xi32>
      %77 = arith.addi %8, %76 : vector<16x16xi32>
      %c16_i32_59 = arith.constant 16 : i32
      %78 = vector.broadcast %c16_i32_59 : i32 to vector<16x16xi32>
      %79 = arith.cmpi slt, %77, %78 : vector<16x16xi32>
      %80 = arith.andi %75, %79 : vector<16x16xi1>
      %81 = arith.andi %80, %22 : vector<16x16xi1>
      %cst_60 = arith.constant 2.500000e-01 : f32
      %82 = vector.broadcast %cst_60 : f32 to vector<16x16xf32>
      %83 = arith.mulf %71, %82 : vector<16x16xf32>
      %cst_61 = arith.constant 0.000000e+00 : f32
      %84 = vector.broadcast %cst_61 : f32 to vector<16x16xf32>
      %85 = arith.select %81, %83, %84 : vector<16x16xi1>, vector<16x16xf32>
      %c4_i32 = arith.constant 4 : i32
      %86 = arith.muli %64, %c4_i32 : i32
      %c0_i32_62 = arith.constant 0 : i32
      %87 = arith.addi %86, %c0_i32_62 : i32
      %c0_63 = arith.constant 0 : index
      %88 = arith.index_cast %87 : i32 to index
      %c0_64 = arith.constant 0 : index
      %c0_65 = arith.constant 0 : index
      %89 = vector.load %arg3[%c0_63, %88, %c0_64, %c0_65] : memref<1x12x16x16xf32, #tpu.memory_space<vmem>>, vector<1x1x16x16xf32>
      %90 = vector.shape_cast %89 : vector<1x1x16x16xf32> to vector<16x16xf32>
      %91 = vector.shape_cast %85 : vector<16x16xf32> to vector<1x1x16x16xf32>
      tpu.vector_store %arg3[%c0_63, %88, %c0_64, %c0_65], %91 {strides = array<i32>} : memref<1x12x16x16xf32, #tpu.memory_space<vmem>>, vector<1x1x16x16xf32>,
    }
    %c3_i32_17 = arith.constant 3 : i32
    %24 = vector.extract_strided_slice %3 {offsets = [0, 0, 15], sizes = [4, 16, 1], strides = [1, 1, 1]} : vector<4x16x16xf32> to vector<4x16x1xf32>
    %25 = vector.extract_strided_slice %3 {offsets = [0, 0, 0], sizes = [4, 16, 15], strides = [1, 1, 1]} : vector<4x16x16xf32> to vector<4x16x15xf32>
    %26 = tpu.concatenate %24, %25 in 2 : vector<4x16x1xf32>, vector<4x16x15xf32> -> vector<4x16x16xf32>
    %c0_18 = arith.constant 0 : index
    %c1_19 = arith.constant 1 : index
    %c0_20 = arith.constant 0 : index
    %27 = vector.load %arg4[%c0_18, %c1_19, %c0_20] : memref<4x18x16xf32, #tpu.memory_space<vmem>>, vector<4x16x16xf32>
    tpu.vector_store %arg4[%c0_18, %c1_19, %c0_20], %26 {strides = array<i32>} : memref<4x18x16xf32, #tpu.memory_space<vmem>>, vector<4x16x16xf32>,
    %c-1_i32 = arith.constant -1 : i32
    %28 = vector.broadcast %c-1_i32 : i32 to vector<16x16xi32>
    %29 = arith.addi %9, %28 : vector<16x16xi32>
    %c0_i32_21 = arith.constant 0 : i32
    %30 = vector.broadcast %c0_i32_21 : i32 to vector<16x16xi32>
    %31 = arith.cmpi sge, %29, %30 : vector<16x16xi32>
    %c-1_i32_22 = arith.constant -1 : i32
    %32 = vector.broadcast %c-1_i32_22 : i32 to vector<16x16xi32>
    %33 = arith.addi %9, %32 : vector<16x16xi32>
    %c16_i32_23 = arith.constant 16 : i32
    %34 = vector.broadcast %c16_i32_23 : i32 to vector<16x16xi32>
    %35 = arith.cmpi slt, %33, %34 : vector<16x16xi32>
    %36 = arith.andi %31, %35 : vector<16x16xi1>
    %c0_i32_24 = arith.constant 0 : i32
    %c3_i32_25 = arith.constant 3 : i32
    %37 = arith.addi %c0_i32_24, %c3_i32_25 : i32
    %c1_i32_26 = arith.constant 1 : i32
    scf.for %arg5 = %c0_i32_24 to %37 step %c1_i32_26  : i32 {
      %c1_i32_50 = arith.constant 1 : i32
      %63 = arith.muli %arg5, %c1_i32_50 : i32
      %c0_i32_51 = arith.constant 0 : i32
      %64 = arith.addi %c0_i32_51, %63 : i32
      %c1_i32_52 = arith.constant 1 : i32
      %65 = arith.muli %64, %c1_i32_52 : i32
      %c1_i32_53 = arith.constant 1 : i32
      %66 = arith.subi %65, %c1_i32_53 : i32
      %c1_i32_54 = arith.constant 1 : i32
      %67 = arith.muli %64, %c1_i32_54 : i32
      %c0_55 = arith.constant 0 : index
      %68 = arith.index_cast %67 : i32 to index
      %c0_56 = arith.constant 0 : index
      %69 = vector.load %arg4[%c0_55, %68, %c0_56] : memref<4x18x16xf32, #tpu.memory_space<vmem>>, vector<4x16x16xf32>
      %70 = arith.mulf %1, %69 : vector<4x16x16xf32>
      %cst_57 = arith.constant dense<0.000000e+00> : vector<16x16xf32>
      %71 = vector.multi_reduction <add>, %70, %cst_57 [0] : vector<4x16x16xf32> to vector<16x16xf32>
      %72 = vector.broadcast %66 : i32 to vector<16x16xi32>
      %73 = arith.addi %8, %72 : vector<16x16xi32>
      %c0_i32_58 = arith.constant 0 : i32
      %74 = vector.broadcast %c0_i32_58 : i32 to vector<16x16xi32>
      %75 = arith.cmpi sge, %73, %74 : vector<16x16xi32>
      %76 = vector.broadcast %66 : i32 to vector<16x16xi32>
      %77 = arith.addi %8, %76 : vector<16x16xi32>
      %c16_i32_59 = arith.constant 16 : i32
      %78 = vector.broadcast %c16_i32_59 : i32 to vector<16x16xi32>
      %79 = arith.cmpi slt, %77, %78 : vector<16x16xi32>
      %80 = arith.andi %75, %79 : vector<16x16xi1>
      %81 = arith.andi %80, %36 : vector<16x16xi1>
      %cst_60 = arith.constant 2.500000e-01 : f32
      %82 = vector.broadcast %cst_60 : f32 to vector<16x16xf32>
      %83 = arith.mulf %71, %82 : vector<16x16xf32>
      %cst_61 = arith.constant 0.000000e+00 : f32
      %84 = vector.broadcast %cst_61 : f32 to vector<16x16xf32>
      %85 = arith.select %81, %83, %84 : vector<16x16xi1>, vector<16x16xf32>
      %c4_i32 = arith.constant 4 : i32
      %86 = arith.muli %64, %c4_i32 : i32
      %c1_i32_62 = arith.constant 1 : i32
      %87 = arith.addi %86, %c1_i32_62 : i32
      %c0_63 = arith.constant 0 : index
      %88 = arith.index_cast %87 : i32 to index
      %c0_64 = arith.constant 0 : index
      %c0_65 = arith.constant 0 : index
      %89 = vector.load %arg3[%c0_63, %88, %c0_64, %c0_65] : memref<1x12x16x16xf32, #tpu.memory_space<vmem>>, vector<1x1x16x16xf32>
      %90 = vector.shape_cast %89 : vector<1x1x16x16xf32> to vector<16x16xf32>
      %91 = vector.shape_cast %85 : vector<16x16xf32> to vector<1x1x16x16xf32>
      tpu.vector_store %arg3[%c0_63, %88, %c0_64, %c0_65], %91 {strides = array<i32>} : memref<1x12x16x16xf32, #tpu.memory_space<vmem>>, vector<1x1x16x16xf32>,
    }
    %c3_i32_27 = arith.constant 3 : i32
    %c0_28 = arith.constant 0 : index
    %c1_29 = arith.constant 1 : index
    %c0_30 = arith.constant 0 : index
    %38 = vector.load %arg4[%c0_28, %c1_29, %c0_30] : memref<4x18x16xf32, #tpu.memory_space<vmem>>, vector<4x16x16xf32>
    tpu.vector_store %arg4[%c0_28, %c1_29, %c0_30], %3 {strides = array<i32>} : memref<4x18x16xf32, #tpu.memory_space<vmem>>, vector<4x16x16xf32>,
    %c0_i32_31 = arith.constant 0 : i32
    %39 = vector.broadcast %c0_i32_31 : i32 to vector<16x16xi32>
    %40 = arith.addi %9, %39 : vector<16x16xi32>
    %c0_i32_32 = arith.constant 0 : i32
    %41 = vector.broadcast %c0_i32_32 : i32 to vector<16x16xi32>
    %42 = arith.cmpi sge, %40, %41 : vector<16x16xi32>
    %c0_i32_33 = arith.constant 0 : i32
    %43 = vector.broadcast %c0_i32_33 : i32 to vector<16x16xi32>
    %44 = arith.addi %9, %43 : vector<16x16xi32>
    %c16_i32_34 = arith.constant 16 : i32
    %45 = vector.broadcast %c16_i32_34 : i32 to vector<16x16xi32>
    %46 = arith.cmpi slt, %44, %45 : vector<16x16xi32>
    %47 = arith.andi %42, %46 : vector<16x16xi1>
    %c0_i32_35 = arith.constant 0 : i32
    %c3_i32_36 = arith.constant 3 : i32
    %48 = arith.addi %c0_i32_35, %c3_i32_36 : i32
    %c1_i32_37 = arith.constant 1 : i32
    scf.for %arg5 = %c0_i32_35 to %48 step %c1_i32_37  : i32 {
      %c1_i32_50 = arith.constant 1 : i32
      %63 = arith.muli %arg5, %c1_i32_50 : i32
      %c0_i32_51 = arith.constant 0 : i32
      %64 = arith.addi %c0_i32_51, %63 : i32
      %c1_i32_52 = arith.constant 1 : i32
      %65 = arith.muli %64, %c1_i32_52 : i32
      %c1_i32_53 = arith.constant 1 : i32
      %66 = arith.subi %65, %c1_i32_53 : i32
      %c1_i32_54 = arith.constant 1 : i32
      %67 = arith.muli %64, %c1_i32_54 : i32
      %c0_55 = arith.constant 0 : index
      %68 = arith.index_cast %67 : i32 to index
      %c0_56 = arith.constant 0 : index
      %69 = vector.load %arg4[%c0_55, %68, %c0_56] : memref<4x18x16xf32, #tpu.memory_space<vmem>>, vector<4x16x16xf32>
      %70 = arith.mulf %1, %69 : vector<4x16x16xf32>
      %cst_57 = arith.constant dense<0.000000e+00> : vector<16x16xf32>
      %71 = vector.multi_reduction <add>, %70, %cst_57 [0] : vector<4x16x16xf32> to vector<16x16xf32>
      %72 = vector.broadcast %66 : i32 to vector<16x16xi32>
      %73 = arith.addi %8, %72 : vector<16x16xi32>
      %c0_i32_58 = arith.constant 0 : i32
      %74 = vector.broadcast %c0_i32_58 : i32 to vector<16x16xi32>
      %75 = arith.cmpi sge, %73, %74 : vector<16x16xi32>
      %76 = vector.broadcast %66 : i32 to vector<16x16xi32>
      %77 = arith.addi %8, %76 : vector<16x16xi32>
      %c16_i32_59 = arith.constant 16 : i32
      %78 = vector.broadcast %c16_i32_59 : i32 to vector<16x16xi32>
      %79 = arith.cmpi slt, %77, %78 : vector<16x16xi32>
      %80 = arith.andi %75, %79 : vector<16x16xi1>
      %81 = arith.andi %80, %47 : vector<16x16xi1>
      %cst_60 = arith.constant 2.500000e-01 : f32
      %82 = vector.broadcast %cst_60 : f32 to vector<16x16xf32>
      %83 = arith.mulf %71, %82 : vector<16x16xf32>
      %cst_61 = arith.constant 0.000000e+00 : f32
      %84 = vector.broadcast %cst_61 : f32 to vector<16x16xf32>
      %85 = arith.select %81, %83, %84 : vector<16x16xi1>, vector<16x16xf32>
      %c4_i32 = arith.constant 4 : i32
      %86 = arith.muli %64, %c4_i32 : i32
      %c2_i32 = arith.constant 2 : i32
      %87 = arith.addi %86, %c2_i32 : i32
      %c0_62 = arith.constant 0 : index
      %88 = arith.index_cast %87 : i32 to index
      %c0_63 = arith.constant 0 : index
      %c0_64 = arith.constant 0 : index
      %89 = vector.load %arg3[%c0_62, %88, %c0_63, %c0_64] : memref<1x12x16x16xf32, #tpu.memory_space<vmem>>, vector<1x1x16x16xf32>
      %90 = vector.shape_cast %89 : vector<1x1x16x16xf32> to vector<16x16xf32>
      %91 = vector.shape_cast %85 : vector<16x16xf32> to vector<1x1x16x16xf32>
      tpu.vector_store %arg3[%c0_62, %88, %c0_63, %c0_64], %91 {strides = array<i32>} : memref<1x12x16x16xf32, #tpu.memory_space<vmem>>, vector<1x1x16x16xf32>,
    }
    %c3_i32_38 = arith.constant 3 : i32
    %49 = vector.extract_strided_slice %3 {offsets = [0, 0, 1], sizes = [4, 16, 15], strides = [1, 1, 1]} : vector<4x16x16xf32> to vector<4x16x15xf32>
    %50 = vector.extract_strided_slice %3 {offsets = [0, 0, 0], sizes = [4, 16, 1], strides = [1, 1, 1]} : vector<4x16x16xf32> to vector<4x16x1xf32>
    %51 = tpu.concatenate %49, %50 in 2 : vector<4x16x15xf32>, vector<4x16x1xf32> -> vector<4x16x16xf32>
    %c0_39 = arith.constant 0 : index
    %c1_40 = arith.constant 1 : index
    %c0_41 = arith.constant 0 : index
    %52 = vector.load %arg4[%c0_39, %c1_40, %c0_41] : memref<4x18x16xf32, #tpu.memory_space<vmem>>, vector<4x16x16xf32>
    tpu.vector_store %arg4[%c0_39, %c1_40, %c0_41], %51 {strides = array<i32>} : memref<4x18x16xf32, #tpu.memory_space<vmem>>, vector<4x16x16xf32>,
    %c1_i32_42 = arith.constant 1 : i32
    %53 = vector.broadcast %c1_i32_42 : i32 to vector<16x16xi32>
    %54 = arith.addi %9, %53 : vector<16x16xi32>
    %c0_i32_43 = arith.constant 0 : i32
    %55 = vector.broadcast %c0_i32_43 : i32 to vector<16x16xi32>
    %56 = arith.cmpi sge, %54, %55 : vector<16x16xi32>
    %c1_i32_44 = arith.constant 1 : i32
    %57 = vector.broadcast %c1_i32_44 : i32 to vector<16x16xi32>
    %58 = arith.addi %9, %57 : vector<16x16xi32>
    %c16_i32_45 = arith.constant 16 : i32
    %59 = vector.broadcast %c16_i32_45 : i32 to vector<16x16xi32>
    %60 = arith.cmpi slt, %58, %59 : vector<16x16xi32>
    %61 = arith.andi %56, %60 : vector<16x16xi1>
    %c0_i32_46 = arith.constant 0 : i32
    %c3_i32_47 = arith.constant 3 : i32
    %62 = arith.addi %c0_i32_46, %c3_i32_47 : i32
    %c1_i32_48 = arith.constant 1 : i32
    scf.for %arg5 = %c0_i32_46 to %62 step %c1_i32_48  : i32 {
      %c1_i32_50 = arith.constant 1 : i32
      %63 = arith.muli %arg5, %c1_i32_50 : i32
      %c0_i32_51 = arith.constant 0 : i32
      %64 = arith.addi %c0_i32_51, %63 : i32
      %c1_i32_52 = arith.constant 1 : i32
      %65 = arith.muli %64, %c1_i32_52 : i32
      %c1_i32_53 = arith.constant 1 : i32
      %66 = arith.subi %65, %c1_i32_53 : i32
      %c1_i32_54 = arith.constant 1 : i32
      %67 = arith.muli %64, %c1_i32_54 : i32
      %c0_55 = arith.constant 0 : index
      %68 = arith.index_cast %67 : i32 to index
      %c0_56 = arith.constant 0 : index
      %69 = vector.load %arg4[%c0_55, %68, %c0_56] : memref<4x18x16xf32, #tpu.memory_space<vmem>>, vector<4x16x16xf32>
      %70 = arith.mulf %1, %69 : vector<4x16x16xf32>
      %cst_57 = arith.constant dense<0.000000e+00> : vector<16x16xf32>
      %71 = vector.multi_reduction <add>, %70, %cst_57 [0] : vector<4x16x16xf32> to vector<16x16xf32>
      %72 = vector.broadcast %66 : i32 to vector<16x16xi32>
      %73 = arith.addi %8, %72 : vector<16x16xi32>
      %c0_i32_58 = arith.constant 0 : i32
      %74 = vector.broadcast %c0_i32_58 : i32 to vector<16x16xi32>
      %75 = arith.cmpi sge, %73, %74 : vector<16x16xi32>
      %76 = vector.broadcast %66 : i32 to vector<16x16xi32>
      %77 = arith.addi %8, %76 : vector<16x16xi32>
      %c16_i32_59 = arith.constant 16 : i32
      %78 = vector.broadcast %c16_i32_59 : i32 to vector<16x16xi32>
      %79 = arith.cmpi slt, %77, %78 : vector<16x16xi32>
      %80 = arith.andi %75, %79 : vector<16x16xi1>
      %81 = arith.andi %80, %61 : vector<16x16xi1>
      %cst_60 = arith.constant 2.500000e-01 : f32
      %82 = vector.broadcast %cst_60 : f32 to vector<16x16xf32>
      %83 = arith.mulf %71, %82 : vector<16x16xf32>
      %cst_61 = arith.constant 0.000000e+00 : f32
      %84 = vector.broadcast %cst_61 : f32 to vector<16x16xf32>
      %85 = arith.select %81, %83, %84 : vector<16x16xi1>, vector<16x16xf32>
      %c4_i32 = arith.constant 4 : i32
      %86 = arith.muli %64, %c4_i32 : i32
      %c3_i32_62 = arith.constant 3 : i32
      %87 = arith.addi %86, %c3_i32_62 : i32
      %c0_63 = arith.constant 0 : index
      %88 = arith.index_cast %87 : i32 to index
      %c0_64 = arith.constant 0 : index
      %c0_65 = arith.constant 0 : index
      %89 = vector.load %arg3[%c0_63, %88, %c0_64, %c0_65] : memref<1x12x16x16xf32, #tpu.memory_space<vmem>>, vector<1x1x16x16xf32>
      %90 = vector.shape_cast %89 : vector<1x1x16x16xf32> to vector<16x16xf32>
      %91 = vector.shape_cast %85 : vector<16x16xf32> to vector<1x1x16x16xf32>
      tpu.vector_store %arg3[%c0_63, %88, %c0_64, %c0_65], %91 {strides = array<i32>} : memref<1x12x16x16xf32, #tpu.memory_space<vmem>>, vector<1x1x16x16xf32>,
    }
    %c3_i32_49 = arith.constant 3 : i32
    return
  }
  func.func @transform_0(%arg0: i32) -> (i32, i32, i32, i32) {
    %c0_i32 = arith.constant 0 : i32
    %c0_i32_0 = arith.constant 0 : i32
    %c0_i32_1 = arith.constant 0 : i32
    %c0_i32_2 = arith.constant 0 : i32
    return %arg0, %c0_i32, %c0_i32_0, %c0_i32_1 : i32, i32, i32, i32
  }
  func.func @transform_1(%arg0: i32) -> (i32, i32, i32, i32) {
    %c0_i32 = arith.constant 0 : i32
    %c0_i32_0 = arith.constant 0 : i32
    %c0_i32_1 = arith.constant 0 : i32
    %c0_i32_2 = arith.constant 0 : i32
    return %arg0, %c0_i32, %c0_i32_0, %c0_i32_1 : i32, i32, i32, i32
  }
  func.func @transform_2(%arg0: i32) -> (i32, i32, i32, i32) {
    %c0_i32 = arith.constant 0 : i32
    %c0_i32_0 = arith.constant 0 : i32
    %c0_i32_1 = arith.constant 0 : i32
    %c0_i32_2 = arith.constant 0 : i32
    return %arg0, %c0_i32, %c0_i32_0, %c0_i32_1 : i32, i32, i32, i32
  }
}

</mosaic_0001>

<llo_original>
// kernel: tpu_custom_call.1
$region0: #{tpu_custom_call.1}
  #allocation0 [shape = 'u32[]', space=smem, size = 0x4, offset = 0x4, fixed_abs, tag = 'smem constant byte address 0x4 - core index']
  #allocation1 [shape = 'u32[72,128]{1,0:T(1,128)}', space=vmem, size = 0x9000, scoped, tag = 'internal scratch']
  #allocation2 [shape = 'f32[4,18,16]{2,1,0:T(8,128)}', space=vmem, size = 0xc000, scoped, tag = 'scratch operand']
  %s0 = inlined_call_operand.hbm [shape: f32[2,4,16,16], index: 0, kind: input, shape index: {}]
  %s1 = inlined_call_operand.hbm [shape: f32[2,4,16,16], index: 1, kind: input, shape index: {}]
  %s2 = inlined_call_operand.hbm [shape: f32[2,12,16,16], index: 2, kind: output, shape index: {}]
  %s3 = sld [smem:[#allocation0]]
  $region77: #{tpu_custom_call.1} parent=0
    _
  %s5 = ssub.s32 1, %s3
  %s6 = scalar_select 0, %s5, %s3
  $region1: #{tpu_custom_call.1} parent=0
    #allocation3 [shape = 'u8[65536]{0}', space=vmem, size = 0x10000, scoped, tag = 'input window, operand 0']
    #allocation4 [shape = 's32[2]{0}', space=sflag, size = 0x8, scoped, tag = 'scoped memory for tpu_custom_call.1']
    #allocation5 [shape = 's32[2]{0}', space=sflag, size = 0x8, scoped, tag = 'scoped memory for tpu_custom_call.1']
    #allocation6 [shape = 'u8[65536]{0}', space=vmem, size = 0x10000, scoped, tag = 'input window, operand 1']
    #allocation7 [shape = 's32[2]{0}', space=sflag, size = 0x8, scoped, tag = 'scoped memory for tpu_custom_call.1']
    #allocation8 [shape = 'u8[196608]{0}', space=vmem, size = 0x30000, scoped, tag = 'output window, operand 0']
    %7 = vsyncpa [#allocation4], 0
    %s8 = scalar_lea.sflag [#allocation4], 1
    %9 = vsyncpa %s8, 0
    %10 = vsyncpa [#allocation7], 0
    %s11 = scalar_lea.sflag [#allocation7], 1
    %12 = vsyncpa %s11, 0
    %13 = vsyncpa [#allocation5], 0
    %s14 = scalar_lea.sflag [#allocation5], 1
    %15 = vsyncpa %s14, 0
    loop: start=0, step=1, limit=4
    $region2: #{tpu_custom_call.1} parent=1 // loop_pre_header
      _
    $region3: #{tpu_custom_call.1} parent=1 // loop_header
      %s17 = sphi 0, %s21
      %p18 = scmp.ge.s32.totalorder %s17, 4
      %s27 = sphi 0, %s29
      %s30 = sphi 0, %s27
      %s31 = sphi 0, %s30
      %s47 = sphi 0, %s31
      %s53 = sphi 0, %s55
      %s56 = sphi 0, %s53
      %s57 = sphi 0, %s56
      %s73 = sphi 0, %s57
      %s79 = sphi 0, %s81
      %s82 = sphi 0, %s79
      %s83 = sphi 0, %s82
      %s99 = sphi 0, %s83
    $region4: #{tpu_custom_call.1} parent=1 // loop_header_branch
      %20 = sbr.rel (%p18) target = $region8
    $region5: #{tpu_custom_call.1} parent=1 // loop_body
      %s22 = ssub.s32 %s17, 1
      %s23 = ssub.s32 %s17, 2
      %s24 = sadd.s32 %s17, 1
      %s25 = ssub.s32 %s17, %s24
      %p26 = scmp.eq.s32.totalorder %s25, 0
      %s28 = sadd.s32 %s27, 1
      %s29 = scalar_select %p26, %s27, %s28
      %p32 = pneg %p26
      %p33 = scmp.eq.s32.totalorder %s17, 1
      %p34 = por %p32, %p33
      %p35 = scmp.ne.s32.totalorder %s27, %s30
      %p36 = scmp.eq.s32.totalorder %s17, 0
      %p37 = por %p35, %p36
      %p38 = scmp.ne.s32.totalorder %s27, %s30
      %p39 = scmp.eq.s32.totalorder %s22, 1
      %p40 = por %p38, %p39
      %p41 = scmp.ne.s32.totalorder %s30, %s31
      %p42 = scmp.eq.s32.totalorder %s22, 0
      %p43 = por %p41, %p42
      %p44 = scmp.ne.s32.totalorder %s30, %s31
      %p45 = scmp.eq.s32.totalorder %s23, 1
      %p46 = por %p44, %p45
      %p48 = scmp.ne.s32.totalorder %s31, %s47
      %p49 = scmp.eq.s32.totalorder %s23, 0
      %p50 = por %p48, %p49
      %s51 = ssub.s32 %s17, %s24
      %p52 = scmp.eq.s32.totalorder %s51, 0
      %s54 = sadd.s32 %s53, 1
      %s55 = scalar_select %p52, %s53, %s54
      %p58 = pneg %p52
      %p59 = scmp.eq.s32.totalorder %s17, 1
      %p60 = por %p58, %p59
      %p61 = scmp.ne.s32.totalorder %s53, %s56
      %p62 = scmp.eq.s32.totalorder %s17, 0
      %p63 = por %p61, %p62
      %p64 = scmp.ne.s32.totalorder %s53, %s56
      %p65 = scmp.eq.s32.totalorder %s22, 1
      %p66 = por %p64, %p65
      %p67 = scmp.ne.s32.totalorder %s56, %s57
      %p68 = scmp.eq.s32.totalorder %s22, 0
      %p69 = por %p67, %p68
      %p70 = scmp.ne.s32.totalorder %s56, %s57
      %p71 = scmp.eq.s32.totalorder %s23, 1
      %p72 = por %p70, %p71
      %p74 = scmp.ne.s32.totalorder %s57, %s73
      %p75 = scmp.eq.s32.totalorder %s23, 0
      %p76 = por %p74, %p75
      %s77 = ssub.s32 %s17, %s24
      %p78 = scmp.eq.s32.totalorder %s77, 0
      %s80 = sadd.s32 %s79, 1
      %s81 = scalar_select %p78, %s79, %s80
      %p84 = pneg %p78
      %p85 = scmp.eq.s32.totalorder %s17, 1
      %p86 = por %p84, %p85
      %p87 = scmp.ne.s32.totalorder %s79, %s82
      %p88 = scmp.eq.s32.totalorder %s17, 0
      %p89 = por %p87, %p88
      %p90 = scmp.ne.s32.totalorder %s79, %s82
      %p91 = scmp.eq.s32.totalorder %s22, 1
      %p92 = por %p90, %p91
      %p93 = scmp.ne.s32.totalorder %s82, %s83
      %p94 = scmp.eq.s32.totalorder %s22, 0
      %p95 = por %p93, %p94
      %p96 = scmp.ne.s32.totalorder %s82, %s83
      %p97 = scmp.eq.s32.totalorder %s23, 1
      %p98 = por %p96, %p97
      %p100 = scmp.ne.s32.totalorder %s83, %s99
      %p101 = scmp.eq.s32.totalorder %s23, 0
      %p102 = por %p100, %p101
      %p103 = scmp.le.s32.totalorder 1, %s17
      %p104 = scmp.lt.s32.totalorder %s17, 3
      %p105 = pnand %p103, %p104
      %p106 = pneg %p105
      // Predicated region
      $region9: #{tpu_custom_call.1} parent=5 // pred_check
        _
      $region10: #{tpu_custom_call.1} parent=5 // pred_check_branch
        %108 = sbr.rel (%p105) target = $region12
      $region11: #{tpu_custom_call.1} parent=5 // pred_region
        %s109 = ssub.s32 %s17, 1
      $region12: #{tpu_custom_call.1} parent=5 // pred_fallthru
        _
      %p110 = scmp.lt.s32.totalorder %s17, 2
      // Predicated region
      $region13: #{tpu_custom_call.1} parent=5 // pred_check
        %p111 = pneg %p110
      $region14: #{tpu_custom_call.1} parent=5 // pred_check_branch
        %113 = sbr.rel (%p111) target = $region16
      $region15: #{tpu_custom_call.1} parent=5 // pred_region
        // Predicated region
        $region17: #{tpu_custom_call.1} parent=15 // pred_check
          %p114 = pneg %p37
        $region18: #{tpu_custom_call.1} parent=15 // pred_check_branch
          %116 = sbr.rel (%p114) target = $region20
        $region19: #{tpu_custom_call.1} parent=15 // pred_region
          %s117 = sand.u32 %s27, 1
          %s118 = scalar_lea.sflag [#allocation4], %s117
          %s119 = sand.u32 %s27, 1
          %s120 = smul.addr %s119, 64
          %s121 = scalar_lea.vmem [#allocation3], %s120
          %123 = vsyncadd %s118, 0
          %s124 = smul.addr %s17, 8
          %s125 = smul.addr %s124, 8
          %s126 = scalar_lea.hbm %s0, %s125
          %s127 = sshll.u32 %s126, 4
          %s128 = int_to_ptr.hbm [resolvable:$true] %s127
          %s129 = sshll.u32 %s121, 4
          %s130 = int_to_ptr.vmem [resolvable:$true] %s129
          %135 = dma.hbm_to_vmem [thread:$0]  %s128, 1024, %s130, %s118, 128, 128, 8
        $region20: #{tpu_custom_call.1} parent=15 // pred_fallthru
          _
        // Predicated region
        $region21: #{tpu_custom_call.1} parent=15 // pred_check
          %p136 = pneg %p63
        $region22: #{tpu_custom_call.1} parent=15 // pred_check_branch
          %138 = sbr.rel (%p136) target = $region24
        $region23: #{tpu_custom_call.1} parent=15 // pred_region
          %s139 = sand.u32 %s53, 1
          %s140 = scalar_lea.sflag [#allocation7], %s139
          %s141 = sand.u32 %s53, 1
          %s142 = smul.addr %s141, 64
          %s143 = scalar_lea.vmem [#allocation6], %s142
          %145 = vsyncadd %s140, 0
          %s146 = smul.addr %s17, 8
          %s147 = smul.addr %s146, 8
          %s148 = scalar_lea.hbm %s1, %s147
          %s149 = sshll.u32 %s148, 4
          %s150 = int_to_ptr.hbm [resolvable:$true] %s149
          %s151 = sshll.u32 %s143, 4
          %s152 = int_to_ptr.vmem [resolvable:$true] %s151
          %157 = dma.hbm_to_vmem [thread:$0]  %s150, 1024, %s152, %s140, 128, 128, 8
        $region24: #{tpu_custom_call.1} parent=15 // pred_fallthru
          _
      $region16: #{tpu_custom_call.1} parent=5 // pred_fallthru
        _
      %p158 = scmp.le.s32.totalorder 1, %s17
      %p159 = scmp.lt.s32.totalorder %s17, 3
      %p160 = pnand %p158, %p159
      %p161 = pneg %p160
      // Predicated region
      $region25: #{tpu_custom_call.1} parent=5 // pred_check
        _
      $region26: #{tpu_custom_call.1} parent=5 // pred_check_branch
        %163 = sbr.rel (%p160) target = $region28
      $region27: #{tpu_custom_call.1} parent=5 // pred_region
        %s164 = ssub.s32 %s17, 1
        %s165 = sand.u32 %s30, 1
        %s166 = scalar_lea.sflag [#allocation4], %s165
        %s167 = sand.u32 %s30, 1
        %s168 = smul.addr %s167, 64
        %s169 = scalar_lea.vmem [#allocation3], %s168
        // Predicated region
        $region29: #{tpu_custom_call.1} parent=27 // pred_check
          %p170 = pneg %p43
        $region30: #{tpu_custom_call.1} parent=27 // pred_check_branch
          %172 = sbr.rel (%p170) target = $region32
        $region31: #{tpu_custom_call.1} parent=27 // pred_region
          %174 = dma.done %s166, 1024
        $region32: #{tpu_custom_call.1} parent=27 // pred_fallthru
          _
        %s175 = sand.u32 %s56, 1
        %s176 = scalar_lea.sflag [#allocation7], %s175
        %s177 = sand.u32 %s56, 1
        %s178 = smul.addr %s177, 64
        %s179 = scalar_lea.vmem [#allocation6], %s178
        // Predicated region
        $region33: #{tpu_custom_call.1} parent=27 // pred_check
          %p180 = pneg %p69
        $region34: #{tpu_custom_call.1} parent=27 // pred_check_branch
          %182 = sbr.rel (%p180) target = $region36
        $region35: #{tpu_custom_call.1} parent=27 // pred_region
          %184 = dma.done %s176, 1024
        $region36: #{tpu_custom_call.1} parent=27 // pred_fallthru
          _
        %s185 = sand.u32 %s30, 1
        %s186 = scalar_lea.sflag [#allocation4], %s185
        %s187 = sand.u32 %s30, 1
        %s188 = smul.addr %s187, 64
        %s189 = scalar_lea.vmem [#allocation3], %s188
        %p190 = pneg %p43
        %p191 = pneg %p40
        %s192 = sand.u32 %s56, 1
        %s193 = scalar_lea.sflag [#allocation7], %s192
        %s194 = sand.u32 %s56, 1
        %s195 = smul.addr %s194, 64
        %s196 = scalar_lea.vmem [#allocation6], %s195
        %p197 = pneg %p69
        %p198 = pneg %p66
        %p199 = pneg %p95
        %p200 = pneg %p92
        %s201 = sand.u32 %s82, 1
        %s202 = scalar_lea.sflag [#allocation5], %s201
        %s203 = sand.u32 %s82, 1
        %s204 = smul.addr %s203, 192
        %s205 = scalar_lea.vmem [#allocation8], %s204
        %v206 = vld [vmem:[%s169] sm:$0xff]
        %v207 = vld [vmem:[%s169 + $0x8] sm:$0xff]
        %v208 = vld [vmem:[%s169 + $0x10] sm:$0xff]
        %v209 = vld [vmem:[%s169 + $0x18] sm:$0xff]
        %v210 = vld [vmem:[%s169 + $0x20] sm:$0xff]
        %v211 = vld [vmem:[%s169 + $0x28] sm:$0xff]
        %v212 = vld [vmem:[%s169 + $0x30] sm:$0xff]
        %v213 = vld [vmem:[%s169 + $0x38] sm:$0xff]
        %v214 = vld [vmem:[%s179] sm:$0xff]
        %v215 = vld [vmem:[%s179 + $0x8] sm:$0xff]
        %v216 = vld [vmem:[%s179 + $0x10] sm:$0xff]
        %v217 = vld [vmem:[%s179 + $0x18] sm:$0xff]
        %v218 = vld [vmem:[%s179 + $0x20] sm:$0xff]
        %v219 = vld [vmem:[%s179 + $0x28] sm:$0xff]
        %v220 = vld [vmem:[%s179 + $0x30] sm:$0xff]
        %v221 = vld [vmem:[%s179 + $0x38] sm:$0xff]
        %vm222 = vcmask 122880
        %223 = vst.msk [vmem:[#allocation2] sm:$0x1] %vm222, 0.0
        %224 = vst.msk [vmem:[#allocation2 + $0x18] sm:$0x1] %vm222, 0.0
        %225 = vst.msk [vmem:[#allocation2 + $0x30] sm:$0x1] %vm222, 0.0
        %226 = vst.msk [vmem:[#allocation2 + $0x48] sm:$0x1] %vm222, 0.0
        %227 = vst.msk [vmem:[#allocation2 + $0x11] sm:$0x1] %vm222, 0.0
        %228 = vst.msk [vmem:[#allocation2 + $0x29] sm:$0x1] %vm222, 0.0
        %229 = vst.msk [vmem:[#allocation2 + $0x41] sm:$0x1] %vm222, 0.0
        %230 = vst.msk [vmem:[#allocation2 + $0x59] sm:$0x1] %vm222, 0.0
        %v231 = vlaneseq
        %v232 = vshrl.u32 %v231, 7
        %v233 = vadd.s32 %v232, 8
        %v234 = vlaneseq
        %v235 = vand.u32 %v234, 127
        %244 = vrot.lane.b32.xlu0 %v214, 114
        %v245 = vpop.permute.xlu0 %244
        %246 = vrot.lane.b32.xlu0 %v215, 114
        %v247 = vpop.permute.xlu0 %246
        %248 = vrot.lane.b32.xlu0 %v216, 114
        %v249 = vpop.permute.xlu0 %248
        %250 = vrot.lane.b32.xlu0 %v217, 114
        %v251 = vpop.permute.xlu0 %250
        %252 = vrot.lane.b32.xlu0 %v218, 114
        %v253 = vpop.permute.xlu0 %252
        %254 = vrot.lane.b32.xlu0 %v219, 114
        %v255 = vpop.permute.xlu0 %254
        %256 = vrot.lane.b32.xlu0 %v220, 114
        %v257 = vpop.permute.xlu0 %256
        %258 = vrot.lane.b32.xlu0 %v221, 114
        %v259 = vpop.permute.xlu0 %258
        %268 = vrot.lane.b32.xlu0 %v214, 2
        %v269 = vpop.permute.xlu0 %268
        %270 = vrot.lane.b32.xlu0 %v215, 2
        %v271 = vpop.permute.xlu0 %270
        %272 = vrot.lane.b32.xlu0 %v216, 2
        %v273 = vpop.permute.xlu0 %272
        %274 = vrot.lane.b32.xlu0 %v217, 2
        %v275 = vpop.permute.xlu0 %274
        %276 = vrot.lane.b32.xlu0 %v218, 2
        %v277 = vpop.permute.xlu0 %276
        %278 = vrot.lane.b32.xlu0 %v219, 2
        %v279 = vpop.permute.xlu0 %278
        %280 = vrot.lane.b32.xlu0 %v220, 2
        %v281 = vpop.permute.xlu0 %280
        %282 = vrot.lane.b32.xlu0 %v221, 2
        %v283 = vpop.permute.xlu0 %282
        %vm292 = vcmask 15360
        %v293 = vsel %vm292, %v245, %v269
        %v294 = vsel %vm292, %v247, %v271
        %v295 = vsel %vm292, %v249, %v273
        %v296 = vsel %vm292, %v251, %v275
        %v297 = vsel %vm292, %v253, %v277
        %v298 = vsel %vm292, %v255, %v279
        %v299 = vsel %vm292, %v257, %v281
        %v300 = vsel %vm292, %v259, %v283
        %vm301 = vcmask 130048
        %302 = vst.msk [vmem:[#allocation2 + $0x1] sm:$0xff] %vm301, %v293
        %303 = vst.msk [vmem:[#allocation2 + $0x9] sm:$0xff] %vm301, %v294
        %304 = vst.msk [vmem:[#allocation2 + $0x19] sm:$0xff] %vm301, %v295
        %305 = vst.msk [vmem:[#allocation2 + $0x21] sm:$0xff] %vm301, %v296
        %306 = vst.msk [vmem:[#allocation2 + $0x31] sm:$0xff] %vm301, %v297
        %307 = vst.msk [vmem:[#allocation2 + $0x39] sm:$0xff] %vm301, %v298
        %308 = vst.msk [vmem:[#allocation2 + $0x49] sm:$0xff] %vm301, %v299
        %309 = vst.msk [vmem:[#allocation2 + $0x51] sm:$0xff] %vm301, %v300
        %v310 = vadd.s32 %v235, 4294967294
        %vm311 = vcmp.ge.s32.totalorder %v310, 0
        %vm312 = vcmp.lt.s32.totalorder %v310, 16
        %vm313 = vmand %vm311, %vm312
        loop: start=0, step=1, limit=3
        $region37: #{tpu_custom_call.1} parent=27 // loop_pre_header
          _
        $region38: #{tpu_custom_call.1} parent=27 // loop_header
          %s315 = sphi 0, %s319
          %p316 = scmp.ge.s32.totalorder %s315, 3
        $region39: #{tpu_custom_call.1} parent=27 // loop_header_branch
          %318 = sbr.rel (%p316) target = $region43
        $region40: #{tpu_custom_call.1} parent=27 // loop_body
          %s320 = ssub.s32 %s315, 1
          %s321 = scalar_lea.vmem [#allocation2], %s315
          %v322 = vld [vmem:[%s321] sm:$0xff]
          %v323 = vld [vmem:[%s321 + $0x8] sm:$0xff]
          %v324 = vld [vmem:[%s321 + $0x18] sm:$0xff]
          %v325 = vld [vmem:[%s321 + $0x20] sm:$0xff]
          %v326 = vld [vmem:[%s321 + $0x30] sm:$0xff]
          %v327 = vld [vmem:[%s321 + $0x38] sm:$0xff]
          %v328 = vld [vmem:[%s321 + $0x48] sm:$0xff]
          %v329 = vld [vmem:[%s321 + $0x50] sm:$0xff]
          %v330 = vmul.f32 %v206, %v322
          %v331 = vmul.f32 %v207, %v323
          %v332 = vmul.f32 %v208, %v324
          %v333 = vmul.f32 %v209, %v325
          %v334 = vmul.f32 %v210, %v326
          %v335 = vmul.f32 %v211, %v327
          %v336 = vmul.f32 %v212, %v328
          %v337 = vmul.f32 %v213, %v329
          %v338 = vsel %vm301, %v330, 0.0
          %v339 = vsel %vm301, %v332, 0.0
          %v340 = vadd.f32 %v338, %v339
          %v341 = vsel %vm301, %v334, 0.0
          %v342 = vadd.f32 %v340, %v341
          %v343 = vsel %vm301, %v336, 0.0
          %v344 = vadd.f32 %v342, %v343
          %v345 = vsel %vm301, %v331, 0.0
          %v346 = vsel %vm301, %v333, 0.0
          %v347 = vadd.f32 %v345, %v346
          %v348 = vsel %vm301, %v335, 0.0
          %v349 = vadd.f32 %v347, %v348
          %v350 = vsel %vm301, %v337, 0.0
          %v351 = vadd.f32 %v349, %v350
          %v352 = vstv %s320
          %v353 = vadd.s32 %v232, %v352
          %v354 = vadd.s32 %v233, %v352
          %vm355 = vcmp.ge.s32.totalorder %v353, 0
          %vm356 = vcmp.ge.s32.totalorder %v354, 0
          %vm357 = vcmp.lt.s32.totalorder %v353, 16
          %vm358 = vcmp.lt.s32.totalorder %v354, 16
          %vm359 = vmand %vm355, %vm357
          %vm360 = vmand %vm356, %vm358
          %vm361 = vmand %vm359, %vm313
          %vm362 = vmand %vm360, %vm313
          %v363 = vmul.f32 %v344, 0.25
          %v364 = vmul.f32 %v351, 0.25
          %v365 = vsel %vm361, %v363, 0.0
          %v366 = vsel %vm362, %v364, 0.0
          %s367 = smul.u32 %s315, 4
          %s368 = smul.u32 %s367, 16
          %s369 = scalar_lea.vmem %s205, %s368 [#allocation8]
          %370 = vst.msk [vmem:[%s369] sm:$0xff] %vm301, %v365
          %371 = vst.msk [vmem:[%s369 + $0x8] sm:$0xff] %vm301, %v366
        $region41: #{tpu_custom_call.1} parent=27 // loop_footer
          %s319 = sadd.s32 1, %s315
        $region42: #{tpu_custom_call.1} parent=27 // loop_footer_branch
          %314 = sbr.rel target = $region38
        $region43: #{tpu_custom_call.1} parent=27 // loop_exit
          _
        %372 = vrot.lane.b32.xlu0 %v214, 113
        %v373 = vpop.permute.xlu0 %372
        %374 = vrot.lane.b32.xlu0 %v215, 113
        %v375 = vpop.permute.xlu0 %374
        %376 = vrot.lane.b32.xlu0 %v216, 113
        %v377 = vpop.permute.xlu0 %376
        %378 = vrot.lane.b32.xlu0 %v217, 113
        %v379 = vpop.permute.xlu0 %378
        %380 = vrot.lane.b32.xlu0 %v218, 113
        %v381 = vpop.permute.xlu0 %380
        %382 = vrot.lane.b32.xlu0 %v219, 113
        %v383 = vpop.permute.xlu0 %382
        %384 = vrot.lane.b32.xlu0 %v220, 113
        %v385 = vpop.permute.xlu0 %384
        %386 = vrot.lane.b32.xlu0 %v221, 113
        %v387 = vpop.permute.xlu0 %386
        %396 = vrot.lane.b32.xlu0 %v214, 1
        %v397 = vpop.permute.xlu0 %396
        %398 = vrot.lane.b32.xlu0 %v215, 1
        %v399 = vpop.permute.xlu0 %398
        %400 = vrot.lane.b32.xlu0 %v216, 1
        %v401 = vpop.permute.xlu0 %400
        %402 = vrot.lane.b32.xlu0 %v217, 1
        %v403 = vpop.permute.xlu0 %402
        %404 = vrot.lane.b32.xlu0 %v218, 1
        %v405 = vpop.permute.xlu0 %404
        %406 = vrot.lane.b32.xlu0 %v219, 1
        %v407 = vpop.permute.xlu0 %406
        %408 = vrot.lane.b32.xlu0 %v220, 1
        %v409 = vpop.permute.xlu0 %408
        %410 = vrot.lane.b32.xlu0 %v221, 1
        %v411 = vpop.permute.xlu0 %410
        %vm420 = vcmask 7168
        %v421 = vsel %vm420, %v373, %v397
        %v422 = vsel %vm420, %v375, %v399
        %v423 = vsel %vm420, %v377, %v401
        %v424 = vsel %vm420, %v379, %v403
        %v425 = vsel %vm420, %v381, %v405
        %v426 = vsel %vm420, %v383, %v407
        %v427 = vsel %vm420, %v385, %v409
        %v428 = vsel %vm420, %v387, %v411
        %429 = vst.msk [vmem:[#allocation2 + $0x1] sm:$0xff] %vm301, %v421
        %430 = vst.msk [vmem:[#allocation2 + $0x9] sm:$0xff] %vm301, %v422
        %431 = vst.msk [vmem:[#allocation2 + $0x19] sm:$0xff] %vm301, %v423
        %432 = vst.msk [vmem:[#allocation2 + $0x21] sm:$0xff] %vm301, %v424
        %433 = vst.msk [vmem:[#allocation2 + $0x31] sm:$0xff] %vm301, %v425
        %434 = vst.msk [vmem:[#allocation2 + $0x39] sm:$0xff] %vm301, %v426
        %435 = vst.msk [vmem:[#allocation2 + $0x49] sm:$0xff] %vm301, %v427
        %436 = vst.msk [vmem:[#allocation2 + $0x51] sm:$0xff] %vm301, %v428
        %v437 = vadd.s32 %v235, 4294967295
        %vm438 = vcmp.ge.s32.totalorder %v437, 0
        %vm439 = vcmp.lt.s32.totalorder %v437, 16
        %vm440 = vmand %vm438, %vm439
        loop: start=0, step=1, limit=3
        $region44: #{tpu_custom_call.1} parent=27 // loop_pre_header
          _
        $region45: #{tpu_custom_call.1} parent=27 // loop_header
          %s442 = sphi 0, %s446
          %p443 = scmp.ge.s32.totalorder %s442, 3
        $region46: #{tpu_custom_call.1} parent=27 // loop_header_branch
          %445 = sbr.rel (%p443) target = $region50
        $region47: #{tpu_custom_call.1} parent=27 // loop_body
          %s447 = ssub.s32 %s442, 1
          %s448 = scalar_lea.vmem [#allocation2], %s442
          %v449 = vld [vmem:[%s448] sm:$0xff]
          %v450 = vld [vmem:[%s448 + $0x8] sm:$0xff]
          %v451 = vld [vmem:[%s448 + $0x18] sm:$0xff]
          %v452 = vld [vmem:[%s448 + $0x20] sm:$0xff]
          %v453 = vld [vmem:[%s448 + $0x30] sm:$0xff]
          %v454 = vld [vmem:[%s448 + $0x38] sm:$0xff]
          %v455 = vld [vmem:[%s448 + $0x48] sm:$0xff]
          %v456 = vld [vmem:[%s448 + $0x50] sm:$0xff]
          %v457 = vmul.f32 %v206, %v449
          %v458 = vmul.f32 %v207, %v450
          %v459 = vmul.f32 %v208, %v451
          %v460 = vmul.f32 %v209, %v452
          %v461 = vmul.f32 %v210, %v453
          %v462 = vmul.f32 %v211, %v454
          %v463 = vmul.f32 %v212, %v455
          %v464 = vmul.f32 %v213, %v456
          %v465 = vsel %vm301, %v457, 0.0
          %v466 = vsel %vm301, %v459, 0.0
          %v467 = vadd.f32 %v465, %v466
          %v468 = vsel %vm301, %v461, 0.0
          %v469 = vadd.f32 %v467, %v468
          %v470 = vsel %vm301, %v463, 0.0
          %v471 = vadd.f32 %v469, %v470
          %v472 = vsel %vm301, %v458, 0.0
          %v473 = vsel %vm301, %v460, 0.0
          %v474 = vadd.f32 %v472, %v473
          %v475 = vsel %vm301, %v462, 0.0
          %v476 = vadd.f32 %v474, %v475
          %v477 = vsel %vm301, %v464, 0.0
          %v478 = vadd.f32 %v476, %v477
          %v479 = vstv %s447
          %v480 = vadd.s32 %v232, %v479
          %v481 = vadd.s32 %v233, %v479
          %vm482 = vcmp.ge.s32.totalorder %v480, 0
          %vm483 = vcmp.ge.s32.totalorder %v481, 0
          %vm484 = vcmp.lt.s32.totalorder %v480, 16
          %vm485 = vcmp.lt.s32.totalorder %v481, 16
          %vm486 = vmand %vm482, %vm484
          %vm487 = vmand %vm483, %vm485
          %vm488 = vmand %vm486, %vm440
          %vm489 = vmand %vm487, %vm440
          %v490 = vmul.f32 %v471, 0.25
          %v491 = vmul.f32 %v478, 0.25
          %v492 = vsel %vm488, %v490, 0.0
          %v493 = vsel %vm489, %v491, 0.0
          %s494 = smul.u32 %s442, 4
          %s495 = sadd.s32 %s494, 1
          %s496 = smul.u32 %s495, 16
          %s497 = scalar_lea.vmem %s205, %s496 [#allocation8]
          %498 = vst.msk [vmem:[%s497] sm:$0xff] %vm301, %v492
          %499 = vst.msk [vmem:[%s497 + $0x8] sm:$0xff] %vm301, %v493
        $region48: #{tpu_custom_call.1} parent=27 // loop_footer
          %s446 = sadd.s32 1, %s442
        $region49: #{tpu_custom_call.1} parent=27 // loop_footer_branch
          %441 = sbr.rel target = $region45
        $region50: #{tpu_custom_call.1} parent=27 // loop_exit
          _
        %500 = vst.msk [vmem:[#allocation2 + $0x1] sm:$0xff] %vm301, %v214
        %501 = vst.msk [vmem:[#allocation2 + $0x9] sm:$0xff] %vm301, %v215
        %502 = vst.msk [vmem:[#allocation2 + $0x19] sm:$0xff] %vm301, %v216
        %503 = vst.msk [vmem:[#allocation2 + $0x21] sm:$0xff] %vm301, %v217
        %504 = vst.msk [vmem:[#allocation2 + $0x31] sm:$0xff] %vm301, %v218
        %505 = vst.msk [vmem:[#allocation2 + $0x39] sm:$0xff] %vm301, %v219
        %506 = vst.msk [vmem:[#allocation2 + $0x49] sm:$0xff] %vm301, %v220
        %507 = vst.msk [vmem:[#allocation2 + $0x51] sm:$0xff] %vm301, %v221
        %vm508 = vcmp.ge.s32.totalorder %v235, 0
        %vm509 = vcmp.lt.s32.totalorder %v235, 16
        %vm510 = vmand %vm508, %vm509
        loop: start=0, step=1, limit=3
        $region51: #{tpu_custom_call.1} parent=27 // loop_pre_header
          _
        $region52: #{tpu_custom_call.1} parent=27 // loop_header
          %s512 = sphi 0, %s516
          %p513 = scmp.ge.s32.totalorder %s512, 3
        $region53: #{tpu_custom_call.1} parent=27 // loop_header_branch
          %515 = sbr.rel (%p513) target = $region57
        $region54: #{tpu_custom_call.1} parent=27 // loop_body
          %s517 = ssub.s32 %s512, 1
          %s518 = scalar_lea.vmem [#allocation2], %s512
          %v519 = vld [vmem:[%s518] sm:$0xff]
          %v520 = vld [vmem:[%s518 + $0x8] sm:$0xff]
          %v521 = vld [vmem:[%s518 + $0x18] sm:$0xff]
          %v522 = vld [vmem:[%s518 + $0x20] sm:$0xff]
          %v523 = vld [vmem:[%s518 + $0x30] sm:$0xff]
          %v524 = vld [vmem:[%s518 + $0x38] sm:$0xff]
          %v525 = vld [vmem:[%s518 + $0x48] sm:$0xff]
          %v526 = vld [vmem:[%s518 + $0x50] sm:$0xff]
          %v527 = vmul.f32 %v206, %v519
          %v528 = vmul.f32 %v207, %v520
          %v529 = vmul.f32 %v208, %v521
          %v530 = vmul.f32 %v209, %v522
          %v531 = vmul.f32 %v210, %v523
          %v532 = vmul.f32 %v211, %v524
          %v533 = vmul.f32 %v212, %v525
          %v534 = vmul.f32 %v213, %v526
          %v535 = vsel %vm301, %v527, 0.0
          %v536 = vsel %vm301, %v529, 0.0
          %v537 = vadd.f32 %v535, %v536
          %v538 = vsel %vm301, %v531, 0.0
          %v539 = vadd.f32 %v537, %v538
          %v540 = vsel %vm301, %v533, 0.0
          %v541 = vadd.f32 %v539, %v540
          %v542 = vsel %vm301, %v528, 0.0
          %v543 = vsel %vm301, %v530, 0.0
          %v544 = vadd.f32 %v542, %v543
          %v545 = vsel %vm301, %v532, 0.0
          %v546 = vadd.f32 %v544, %v545
          %v547 = vsel %vm301, %v534, 0.0
          %v548 = vadd.f32 %v546, %v547
          %v549 = vstv %s517
          %v550 = vadd.s32 %v232, %v549
          %v551 = vadd.s32 %v233, %v549
          %vm552 = vcmp.ge.s32.totalorder %v550, 0
          %vm553 = vcmp.ge.s32.totalorder %v551, 0
          %vm554 = vcmp.lt.s32.totalorder %v550, 16
          %vm555 = vcmp.lt.s32.totalorder %v551, 16
          %vm556 = vmand %vm552, %vm554
          %vm557 = vmand %vm553, %vm555
          %vm558 = vmand %vm556, %vm510
          %vm559 = vmand %vm557, %vm510
          %v560 = vmul.f32 %v541, 0.25
          %v561 = vmul.f32 %v548, 0.25
          %v562 = vsel %vm558, %v560, 0.0
          %v563 = vsel %vm559, %v561, 0.0
          %s564 = smul.u32 %s512, 4
          %s565 = sadd.s32 %s564, 2
          %s566 = smul.u32 %s565, 16
          %s567 = scalar_lea.vmem %s205, %s566 [#allocation8]
          %568 = vst.msk [vmem:[%s567] sm:$0xff] %vm301, %v562
          %569 = vst.msk [vmem:[%s567 + $0x8] sm:$0xff] %vm301, %v563
        $region55: #{tpu_custom_call.1} parent=27 // loop_footer
          %s516 = sadd.s32 1, %s512
        $region56: #{tpu_custom_call.1} parent=27 // loop_footer_branch
          %511 = sbr.rel target = $region52
        $region57: #{tpu_custom_call.1} parent=27 // loop_exit
          _
        %570 = vrot.lane.b32.xlu0 %v214, 127
        %v571 = vpop.permute.xlu0 %570
        %572 = vrot.lane.b32.xlu0 %v215, 127
        %v573 = vpop.permute.xlu0 %572
        %574 = vrot.lane.b32.xlu0 %v216, 127
        %v575 = vpop.permute.xlu0 %574
        %576 = vrot.lane.b32.xlu0 %v217, 127
        %v577 = vpop.permute.xlu0 %576
        %578 = vrot.lane.b32.xlu0 %v218, 127
        %v579 = vpop.permute.xlu0 %578
        %580 = vrot.lane.b32.xlu0 %v219, 127
        %v581 = vpop.permute.xlu0 %580
        %582 = vrot.lane.b32.xlu0 %v220, 127
        %v583 = vpop.permute.xlu0 %582
        %584 = vrot.lane.b32.xlu0 %v221, 127
        %v585 = vpop.permute.xlu0 %584
        %594 = vrot.lane.b32.xlu0 %v214, 15
        %v595 = vpop.permute.xlu0 %594
        %596 = vrot.lane.b32.xlu0 %v215, 15
        %v597 = vpop.permute.xlu0 %596
        %598 = vrot.lane.b32.xlu0 %v216, 15
        %v599 = vpop.permute.xlu0 %598
        %600 = vrot.lane.b32.xlu0 %v217, 15
        %v601 = vpop.permute.xlu0 %600
        %602 = vrot.lane.b32.xlu0 %v218, 15
        %v603 = vpop.permute.xlu0 %602
        %604 = vrot.lane.b32.xlu0 %v219, 15
        %v605 = vpop.permute.xlu0 %604
        %606 = vrot.lane.b32.xlu0 %v220, 15
        %v607 = vpop.permute.xlu0 %606
        %608 = vrot.lane.b32.xlu0 %v221, 15
        %v609 = vpop.permute.xlu0 %608
        %vm618 = vcmask 121856
        %v619 = vsel %vm618, %v571, %v595
        %v620 = vsel %vm618, %v573, %v597
        %v621 = vsel %vm618, %v575, %v599
        %v622 = vsel %vm618, %v577, %v601
        %v623 = vsel %vm618, %v579, %v603
        %v624 = vsel %vm618, %v581, %v605
        %v625 = vsel %vm618, %v583, %v607
        %v626 = vsel %vm618, %v585, %v609
        %627 = vst.msk [vmem:[#allocation2 + $0x1] sm:$0xff] %vm301, %v619
        %628 = vst.msk [vmem:[#allocation2 + $0x9] sm:$0xff] %vm301, %v620
        %629 = vst.msk [vmem:[#allocation2 + $0x19] sm:$0xff] %vm301, %v621
        %630 = vst.msk [vmem:[#allocation2 + $0x21] sm:$0xff] %vm301, %v622
        %631 = vst.msk [vmem:[#allocation2 + $0x31] sm:$0xff] %vm301, %v623
        %632 = vst.msk [vmem:[#allocation2 + $0x39] sm:$0xff] %vm301, %v624
        %633 = vst.msk [vmem:[#allocation2 + $0x49] sm:$0xff] %vm301, %v625
        %634 = vst.msk [vmem:[#allocation2 + $0x51] sm:$0xff] %vm301, %v626
        %v635 = vadd.s32 %v235, 1
        %vm636 = vcmp.ge.s32.totalorder %v635, 0
        %vm637 = vcmp.lt.s32.totalorder %v635, 16
        %vm638 = vmand %vm636, %vm637
        loop: start=0, step=1, limit=3
        $region58: #{tpu_custom_call.1} parent=27 // loop_pre_header
          _
        $region59: #{tpu_custom_call.1} parent=27 // loop_header
          %s640 = sphi 0, %s644
          %p641 = scmp.ge.s32.totalorder %s640, 3
        $region60: #{tpu_custom_call.1} parent=27 // loop_header_branch
          %643 = sbr.rel (%p641) target = $region64
        $region61: #{tpu_custom_call.1} parent=27 // loop_body
          %s645 = ssub.s32 %s640, 1
          %s646 = scalar_lea.vmem [#allocation2], %s640
          %v647 = vld [vmem:[%s646] sm:$0xff]
          %v648 = vld [vmem:[%s646 + $0x8] sm:$0xff]
          %v649 = vld [vmem:[%s646 + $0x18] sm:$0xff]
          %v650 = vld [vmem:[%s646 + $0x20] sm:$0xff]
          %v651 = vld [vmem:[%s646 + $0x30] sm:$0xff]
          %v652 = vld [vmem:[%s646 + $0x38] sm:$0xff]
          %v653 = vld [vmem:[%s646 + $0x48] sm:$0xff]
          %v654 = vld [vmem:[%s646 + $0x50] sm:$0xff]
          %v655 = vmul.f32 %v206, %v647
          %v656 = vmul.f32 %v207, %v648
          %v657 = vmul.f32 %v208, %v649
          %v658 = vmul.f32 %v209, %v650
          %v659 = vmul.f32 %v210, %v651
          %v660 = vmul.f32 %v211, %v652
          %v661 = vmul.f32 %v212, %v653
          %v662 = vmul.f32 %v213, %v654
          %v663 = vsel %vm301, %v655, 0.0
          %v664 = vsel %vm301, %v657, 0.0
          %v665 = vadd.f32 %v663, %v664
          %v666 = vsel %vm301, %v659, 0.0
          %v667 = vadd.f32 %v665, %v666
          %v668 = vsel %vm301, %v661, 0.0
          %v669 = vadd.f32 %v667, %v668
          %v670 = vsel %vm301, %v656, 0.0
          %v671 = vsel %vm301, %v658, 0.0
          %v672 = vadd.f32 %v670, %v671
          %v673 = vsel %vm301, %v660, 0.0
          %v674 = vadd.f32 %v672, %v673
          %v675 = vsel %vm301, %v662, 0.0
          %v676 = vadd.f32 %v674, %v675
          %v677 = vstv %s645
          %v678 = vadd.s32 %v232, %v677
          %v679 = vadd.s32 %v233, %v677
          %vm680 = vcmp.ge.s32.totalorder %v678, 0
          %vm681 = vcmp.ge.s32.totalorder %v679, 0
          %vm682 = vcmp.lt.s32.totalorder %v678, 16
          %vm683 = vcmp.lt.s32.totalorder %v679, 16
          %vm684 = vmand %vm680, %vm682
          %vm685 = vmand %vm681, %vm683
          %vm686 = vmand %vm684, %vm638
          %vm687 = vmand %vm685, %vm638
          %v688 = vmul.f32 %v669, 0.25
          %v689 = vmul.f32 %v676, 0.25
          %v690 = vsel %vm686, %v688, 0.0
          %v691 = vsel %vm687, %v689, 0.0
          %s692 = smul.u32 %s640, 4
          %s693 = sadd.s32 %s692, 3
          %s694 = smul.u32 %s693, 16
          %s695 = scalar_lea.vmem %s205, %s694 [#allocation8]
          %696 = vst.msk [vmem:[%s695] sm:$0xff] %vm301, %v690
          %697 = vst.msk [vmem:[%s695 + $0x8] sm:$0xff] %vm301, %v691
        $region62: #{tpu_custom_call.1} parent=27 // loop_footer
          %s644 = sadd.s32 1, %s640
        $region63: #{tpu_custom_call.1} parent=27 // loop_footer_branch
          %639 = sbr.rel target = $region59
        $region64: #{tpu_custom_call.1} parent=27 // loop_exit
          _
        %s698 = sand.u32 %s82, 1
        %s699 = scalar_lea.sflag [#allocation5], %s698
        %s700 = sand.u32 %s82, 1
        %s701 = smul.addr %s700, 192
        %s702 = scalar_lea.vmem [#allocation8], %s701
        // Predicated region
        $region65: #{tpu_custom_call.1} parent=27 // pred_check
          %p703 = pneg %p92
        $region66: #{tpu_custom_call.1} parent=27 // pred_check_branch
          %705 = sbr.rel (%p703) target = $region68
        $region67: #{tpu_custom_call.1} parent=27 // pred_region
          %707 = vsyncadd %s699, 0
          %s708 = smul.addr %s22, 24
          %s709 = smul.addr %s708, 8
          %s710 = scalar_lea.hbm %s2, %s709
          %s711 = sshll.u32 %s702, 4
          %s712 = int_to_ptr.vmem [resolvable:$true] %s711
          %s713 = sshll.u32 %s710, 4
          %s714 = int_to_ptr.hbm [resolvable:$true] %s713
          %719 = dma.vmem_to_hbm [thread:$0]  %s712, 3072, %s714, %s699, 128, 128, 8
        $region68: #{tpu_custom_call.1} parent=27 // pred_fallthru
          _
      $region28: #{tpu_custom_call.1} parent=5 // pred_fallthru
        _
      %p720 = scmp.le.s32.totalorder 2, %s17
      // Predicated region
      $region69: #{tpu_custom_call.1} parent=5 // pred_check
        %p721 = pneg %p720
      $region70: #{tpu_custom_call.1} parent=5 // pred_check_branch
        %723 = sbr.rel (%p721) target = $region72
      $region71: #{tpu_custom_call.1} parent=5 // pred_region
        %s724 = ssub.s32 %s17, 2
        // Predicated region
        $region73: #{tpu_custom_call.1} parent=71 // pred_check
          %p725 = pneg %p98
        $region74: #{tpu_custom_call.1} parent=71 // pred_check_branch
          %727 = sbr.rel (%p725) target = $region76
        $region75: #{tpu_custom_call.1} parent=71 // pred_region
          %s728 = sand.u32 %s83, 1
          %s729 = scalar_lea.sflag [#allocation5], %s728
          %s730 = sand.u32 %s83, 1
          %s731 = smul.addr %s730, 192
          %s732 = scalar_lea.vmem [#allocation8], %s731
          %734 = dma.done %s729, 3072
        $region76: #{tpu_custom_call.1} parent=71 // pred_fallthru
          _
      $region72: #{tpu_custom_call.1} parent=5 // pred_fallthru
        _
    $region6: #{tpu_custom_call.1} parent=1 // loop_footer
      %s21 = sadd.s32 1, %s17
    $region7: #{tpu_custom_call.1} parent=1 // loop_footer_branch
      %16 = sbr.rel target = $region3
    $region8: #{tpu_custom_call.1} parent=1 // loop_exit
      _
    %735 = vsyncpa [#allocation4], 1
    %s736 = scalar_lea.sflag [#allocation4], 1
    %737 = vsyncpa %s736, 1
    %738 = vsyncpa [#allocation7], 1
    %s739 = scalar_lea.sflag [#allocation7], 1
    %740 = vsyncpa %s739, 1
    %741 = vsyncpa [#allocation5], 1
    %s742 = scalar_lea.sflag [#allocation5], 1
    %743 = vsyncpa %s742, 1

</llo_original>
